<compile_context>
chip_gen: v7x
topology: tpu7x:2x2x1
jax: 0.10.0
libtpu: 0.0.40
codegen_flags: <defaults>
</compile_context>

<pallas_src>
import functools

import jax
import jax.numpy as jnp
from jax.experimental import pallas as pl
from jax.experimental.pallas import tpu as pltpu

EPS = 1e-5
MOMENTUM = 0.9  # "alpha" in the reference code


def _make_bn_kernel(count, eps):
    """count = N * H * W (elements reduced per channel), a static Python int."""
    inv_count = 1.0 / float(count)

    def kernel(x_ref, gamma_ref, beta_ref, y_ref, mean_ref, var_ref,
               sum_ref, sumsq_ref, scale_ref, shift_ref):
        # x_ref / y_ref: (C, hw_tile)   gamma/beta/mean/var/scratch: (C, 1)
        p = pl.program_id(0)   # 0 = stats pass, 1 = normalize pass
        n = pl.program_id(1)   # batch index
        t = pl.program_id(2)   # spatial tile index

        is_first = jnp.logical_and(n == 0, t == 0)
        is_last = jnp.logical_and(n == pl.num_programs(1) - 1,
                                  t == pl.num_programs(2) - 1)

        @pl.when(jnp.logical_and(p == 0, is_first))
        def _():
            sum_ref[...] = jnp.zeros_like(sum_ref)
            sumsq_ref[...] = jnp.zeros_like(sumsq_ref)

        @pl.when(p == 0)
        def _():
            x = x_ref[...].astype(jnp.float32)                     # (C, hw_tile)
            sum_ref[...] += jnp.sum(x, axis=-1, keepdims=True)      # (C, 1)
            sumsq_ref[...] += jnp.sum(x * x, axis=-1, keepdims=True)

        @pl.when(jnp.logical_and(p == 0, is_last))
        def _():
            mean = sum_ref[...] * inv_count
            var = jnp.maximum(sumsq_ref[...] * inv_count - mean * mean, 0.0)
            scale = gamma_ref[...].astype(jnp.float32) * jax.lax.rsqrt(var + eps)
            shift = beta_ref[...].astype(jnp.float32) - mean * scale
            scale_ref[...] = scale
            shift_ref[...] = shift
            mean_ref[...] = mean   # written once; copied out at grid end
            var_ref[...] = var

        @pl.when(p == 1)
        def _():
            x = x_ref[...].astype(jnp.float32)
            y_ref[...] = (x * scale_ref[...] + shift_ref[...]).astype(y_ref.dtype)

    return kernel


def _pick_hw_tile(hw, c, itemsize, max_block_bytes=2 * 1024 * 1024):
    """Largest lane-dense tile (multiple of 128) that divides hw and fits the budget."""
    if hw % 128 != 0:
        # Block last dim must be a multiple of 128 or the full extent.
        # TODO(synk): for very large non-128-divisible H*W, pad the lane axis instead.
        return hw
    max_elems = max(128, max_block_bytes // max(1, c * itemsize))
    cap = min(hw, (max_elems // 128) * 128)
    t = cap
    while t >= 128:
        if hw % t == 0:
            return t
        t -= 128
    return hw


def batch_norm_conv_forward(x_nchw, gamma, beta, running_mean, running_var,
                            eps=EPS, momentum=MOMENTUM):
    """Training-mode BatchNorm forward for 4-D NCHW input (is_conv=True branch).

    gamma/beta/running_mean/running_var have PyTorch shape (1, C, 1, 1).
    Returns (Y_nchw, new_running_mean, new_running_var).
    """
    N, C, H, W = x_nchw.shape
    HW = H * W

    # Free reshapes (no transpose, no extra HBM pass).
    x3 = x_nchw.reshape(N, C, HW)
    g2 = gamma.reshape(C, 1).astype(jnp.float32)
    b2 = beta.reshape(C, 1).astype(jnp.float32)

    hw_tile = _pick_hw_tile(HW, C, jnp.dtype(x3.dtype).itemsize)
    n_hw = HW // hw_tile

    kernel = _make_bn_kernel(count=N * HW, eps=eps)

    stat_spec_in = pl.BlockSpec((C, 1), lambda p, n, t: (0, 0))
    stat_spec_out = pl.BlockSpec((C, 1), lambda p, n, t: (0, 0))

    y3, mean2, var2 = pl.pallas_call(
        kernel,
        out_shape=(
            jax.ShapeDtypeStruct((N, C, HW), x3.dtype),
            jax.ShapeDtypeStruct((C, 1), jnp.float32),
            jax.ShapeDtypeStruct((C, 1), jnp.float32),
        ),
        grid_spec=pltpu.PrefetchScalarGridSpec(
            num_scalar_prefetch=0,
            grid=(2, N, n_hw),
            in_specs=[
                pl.BlockSpec((None, C, hw_tile), lambda p, n, t: (n, 0, t)),
                stat_spec_in,   # gamma
                stat_spec_in,   # beta
            ],
            out_specs=(
                # Constant block during the stats pass (no write-backs), tile-varying
                # during the normalize pass.
                pl.BlockSpec((None, C, hw_tile), lambda p, n, t: (n * p, 0, t * p)),
                stat_spec_out,  # mean
                stat_spec_out,  # var
            ),
            scratch_shapes=[
                pltpu.VMEM((C, 1), jnp.float32),  # running per-channel sum
                pltpu.VMEM((C, 1), jnp.float32),  # running per-channel sum of squares
                pltpu.VMEM((C, 1), jnp.float32),  # fused scale  = gamma * rsqrt(var+eps)
                pltpu.VMEM((C, 1), jnp.float32),  # fused shift  = beta - mean * scale
            ],
        ),
        compiler_params=pltpu.CompilerParams(
            # All grid axes carry the stats accumulator -> "arbitrary".
            # TODO(synk): for large C, add a channel-block "parallel" axis so both
            # v7x TensorCores are used; pointless at C=4.
            dimension_semantics=("arbitrary", "arbitrary", "arbitrary"),
            vmem_limit_bytes=32 * 1024 * 1024,
        ),
    )(x3, g2, b2)

    y = y3.reshape(N, C, H, W)
    mean4 = mean2.reshape(1, C, 1, 1)
    var4 = var2.reshape(1, C, 1, 1)

    # Running-stat update (plain JAX glue, matches the reference module exactly).
    new_running_mean = momentum * mean4 + (1.0 - momentum) * running_mean
    new_running_var = momentum * var4 + (1.0 - momentum) * running_var
    return y, new_running_mean, new_running_var


def _reference(x, gamma, beta, running_mean, running_var):
    mean = x.mean(axis=(0, 2, 3), keepdims=True)
    var = ((x - mean) ** 2).mean(axis=(0, 2, 3), keepdims=True)
    x_hat = (x - mean) / jnp.sqrt(var + EPS)
    y = gamma * x_hat + beta
    rm = MOMENTUM * mean + (1.0 - MOMENTUM) * running_mean
    rv = MOMENTUM * var + (1.0 - MOMENTUM) * running_var
    return y, rm, rv


if __name__ == "__main__":
    key = jax.random.PRNGKey(0)
    N, C, H, W = 2, 4, 16, 16
    x = jax.random.normal(key, (N, C, H, W), dtype=jnp.float32)

    # Deterministic parameter init, exactly as the module's __init__ (is_conv=True):
    gamma = jnp.ones((1, C, 1, 1), dtype=jnp.float32)
    beta = jnp.ones((1, C, 1, 1), dtype=jnp.float32)   # ones in the conv branch
    running_mean = jnp.zeros((1, C, 1, 1), dtype=jnp.float32)
    running_var = jnp.zeros((1, C, 1, 1), dtype=jnp.float32)

    fwd = jax.jit(batch_norm_conv_forward)
    y, rm, rv = fwd(x, gamma, beta, running_mean, running_var)
    jax.block_until_ready((y, rm, rv))

    y_ref, rm_ref, rv_ref = _reference(x, gamma, beta, running_mean, running_var)
    assert jnp.allclose(y, y_ref, atol=1e-4, rtol=1e-4)
    assert jnp.allclose(rm, rm_ref, atol=1e-5)
    assert jnp.allclose(rv, rv_ref, atol=1e-5)

    # TODO(synk): eval-mode branch (normalize with running stats) and the 2-D
    # fully-connected branch of the module are not exercised here; the nn.Module
    # defaults to training mode with a 4-D conv input, which is what this implements.
    print("KERNEL_OK")
</pallas_src>

<mosaic_0001>
module attributes {stable_mosaic.version = 11 : i64} {
  func.func @kernel(%arg0: i32, %arg1: i32, %arg2: i32, %arg3: memref<1x4x256xf32, #tpu.memory_space<vmem>>, %arg4: memref<4x1xf32, #tpu.memory_space<vmem>>, %arg5: memref<4x1xf32, #tpu.memory_space<vmem>>, %arg6: memref<1x4x256xf32, #tpu.memory_space<vmem>>, %arg7: memref<4x1xf32, #tpu.memory_space<vmem>>, %arg8: memref<4x1xf32, #tpu.memory_space<vmem>>, %arg9: memref<4x1xf32, #tpu.memory_space<vmem>>, %arg10: memref<4x1xf32, #tpu.memory_space<vmem>>, %arg11: memref<4x1xf32, #tpu.memory_space<vmem>>, %arg12: memref<4x1xf32, #tpu.memory_space<vmem>>) attributes {dimension_semantics = [#tpu.dimension_semantics<arbitrary>, #tpu.dimension_semantics<arbitrary>, #tpu.dimension_semantics<arbitrary>], iteration_bounds = array<i64: 2, 2, 1>, scalar_prefetch = 0 : i64, scratch_operands = 4 : i64, tpu.core_type = #tpu.core_type<tc>, window_params = [{transform_indices = @transform_0, window_bounds = array<i64: 1, 4, 256>}, {pipeline_mode = #tpu.pipeline_mode<synchronous>, transform_indices = @transform_1, window_bounds = array<i64: 4, 1>}, {pipeline_mode = #tpu.pipeline_mode<synchronous>, transform_indices = @transform_2, window_bounds = array<i64: 4, 1>}, {transform_indices = @transform_3, window_bounds = array<i64: 1, 4, 256>}, {pipeline_mode = #tpu.pipeline_mode<synchronous>, transform_indices = @transform_4, window_bounds = array<i64: 4, 1>}, {pipeline_mode = #tpu.pipeline_mode<synchronous>, transform_indices = @transform_5, window_bounds = array<i64: 4, 1>}]} {
    %c0_i32 = arith.constant 0 : i32
    %0 = arith.cmpi eq, %arg1, %c0_i32 : i32
    %c0_i32_0 = arith.constant 0 : i32
    %1 = arith.cmpi eq, %arg2, %c0_i32_0 : i32
    %2 = arith.andi %0, %1 : i1
    %c1_i32 = arith.constant 1 : i32
    %3 = arith.cmpi eq, %arg1, %c1_i32 : i32
    %c0_i32_1 = arith.constant 0 : i32
    %4 = arith.cmpi eq, %arg2, %c0_i32_1 : i32
    %5 = arith.andi %3, %4 : i1
    %c0_i32_2 = arith.constant 0 : i32
    %6 = arith.cmpi eq, %arg0, %c0_i32_2 : i32
    %7 = arith.andi %6, %2 : i1
    %8 = arith.extui %7 : i1 to i32
    %c0_i32_3 = arith.constant 0 : i32
    %9 = arith.cmpi ne, %8, %c0_i32_3 : i32
    scf.if %9 {
      %cst = arith.constant 0.000000e+00 : f32
      %20 = vector.broadcast %cst : f32 to vector<4x1xf32>
      %c0 = arith.constant 0 : index
      %c0_10 = arith.constant 0 : index
      %21 = vector.load %arg9[%c0, %c0_10] : memref<4x1xf32, #tpu.memory_space<vmem>>, vector<4x1xf32>
      tpu.vector_store %arg9[%c0, %c0_10], %20 {strides = array<i32>} : memref<4x1xf32, #tpu.memory_space<vmem>>, vector<4x1xf32>,
      %cst_11 = arith.constant 0.000000e+00 : f32
      %22 = vector.broadcast %cst_11 : f32 to vector<4x1xf32>
      %c0_12 = arith.constant 0 : index
      %c0_13 = arith.constant 0 : index
      %23 = vector.load %arg10[%c0_12, %c0_13] : memref<4x1xf32, #tpu.memory_space<vmem>>, vector<4x1xf32>
      tpu.vector_store %arg10[%c0_12, %c0_13], %22 {strides = array<i32>} : memref<4x1xf32, #tpu.memory_space<vmem>>, vector<4x1xf32>,
    } else {
    }
    %c0_i32_4 = arith.constant 0 : i32
    %10 = arith.cmpi eq, %arg0, %c0_i32_4 : i32
    %11 = arith.extui %10 : i1 to i32
    %c0_i32_5 = arith.constant 0 : i32
    %12 = arith.cmpi ne, %11, %c0_i32_5 : i32
    scf.if %12 {
      %c0 = arith.constant 0 : index
      %c0_10 = arith.constant 0 : index
      %c0_11 = arith.constant 0 : index
      %20 = vector.load %arg3[%c0, %c0_10, %c0_11] : memref<1x4x256xf32, #tpu.memory_space<vmem>>, vector<1x4x256xf32>
      %21 = vector.shape_cast %20 : vector<1x4x256xf32> to vector<4x256xf32>
      %c0_12 = arith.constant 0 : index
      %c0_13 = arith.constant 0 : index
      %22 = vector.load %arg9[%c0_12, %c0_13] : memref<4x1xf32, #tpu.memory_space<vmem>>, vector<4x1xf32>
      %cst = arith.constant dense<0.000000e+00> : vector<4xf32>
      %23 = vector.multi_reduction <add>, %21, %cst [1] : vector<4x256xf32> to vector<4xf32>
      %24 = vector.shape_cast %23 : vector<4xf32> to vector<4x1xf32>
      %25 = arith.addf %22, %24 : vector<4x1xf32>
      %c0_14 = arith.constant 0 : index
      %c0_15 = arith.constant 0 : index
      %26 = vector.load %arg9[%c0_14, %c0_15] : memref<4x1xf32, #tpu.memory_space<vmem>>, vector<4x1xf32>
      tpu.vector_store %arg9[%c0_14, %c0_15], %25 {strides = array<i32>} : memref<4x1xf32, #tpu.memory_space<vmem>>, vector<4x1xf32>,
      %c0_16 = arith.constant 0 : index
      %c0_17 = arith.constant 0 : index
      %27 = vector.load %arg10[%c0_16, %c0_17] : memref<4x1xf32, #tpu.memory_space<vmem>>, vector<4x1xf32>
      %28 = arith.mulf %21, %21 : vector<4x256xf32>
      %cst_18 = arith.constant dense<0.000000e+00> : vector<4xf32>
      %29 = vector.multi_reduction <add>, %28, %cst_18 [1] : vector<4x256xf32> to vector<4xf32>
      %30 = vector.shape_cast %29 : vector<4xf32> to vector<4x1xf32>
      %31 = arith.addf %27, %30 : vector<4x1xf32>
      %c0_19 = arith.constant 0 : index
      %c0_20 = arith.constant 0 : index
      %32 = vector.load %arg10[%c0_19, %c0_20] : memref<4x1xf32, #tpu.memory_space<vmem>>, vector<4x1xf32>
      tpu.vector_store %arg10[%c0_19, %c0_20], %31 {strides = array<i32>} : memref<4x1xf32, #tpu.memory_space<vmem>>, vector<4x1xf32>,
    } else {
    }
    %c0_i32_6 = arith.constant 0 : i32
    %13 = arith.cmpi eq, %arg0, %c0_i32_6 : i32
    %14 = arith.andi %13, %5 : i1
    %15 = arith.extui %14 : i1 to i32
    %c0_i32_7 = arith.constant 0 : i32
    %16 = arith.cmpi ne, %15, %c0_i32_7 : i32
    scf.if %16 {
      %c0 = arith.constant 0 : index
      %c0_10 = arith.constant 0 : index
      %20 = vector.load %arg9[%c0, %c0_10] : memref<4x1xf32, #tpu.memory_space<vmem>>, vector<4x1xf32>
      %cst = arith.constant 0.001953125 : f32
      %21 = vector.broadcast %cst : f32 to vector<4x1xf32>
      %22 = arith.mulf %20, %21 : vector<4x1xf32>
      %c0_11 = arith.constant 0 : index
      %c0_12 = arith.constant 0 : index
      %23 = vector.load %arg10[%c0_11, %c0_12] : memref<4x1xf32, #tpu.memory_space<vmem>>, vector<4x1xf32>
      %cst_13 = arith.constant 0.001953125 : f32
      %24 = vector.broadcast %cst_13 : f32 to vector<4x1xf32>
      %25 = arith.mulf %23, %24 : vector<4x1xf32>
      %26 = arith.mulf %22, %22 : vector<4x1xf32>
      %27 = arith.subf %25, %26 : vector<4x1xf32>
      %cst_14 = arith.constant 0.000000e+00 : f32
      %28 = vector.broadcast %cst_14 : f32 to vector<4x1xf32>
      %29 = arith.maximumf %27, %28 : vector<4x1xf32>
      %c0_15 = arith.constant 0 : index
      %c0_16 = arith.constant 0 : index
      %30 = vector.load %arg4[%c0_15, %c0_16] : memref<4x1xf32, #tpu.memory_space<vmem>>, vector<4x1xf32>
      %cst_17 = arith.constant 9.99999974E-6 : f32
      %31 = vector.broadcast %cst_17 : f32 to vector<4x1xf32>
      %32 = arith.addf %29, %31 : vector<4x1xf32>
      %33 = math.rsqrt %32 : vector<4x1xf32>
      %34 = arith.mulf %30, %33 : vector<4x1xf32>
      %c0_18 = arith.constant 0 : index
      %c0_19 = arith.constant 0 : index
      %35 = vector.load %arg5[%c0_18, %c0_19] : memref<4x1xf32, #tpu.memory_space<vmem>>, vector<4x1xf32>
      %36 = arith.mulf %22, %34 : vector<4x1xf32>
      %37 = arith.subf %35, %36 : vector<4x1xf32>
      %c0_20 = arith.constant 0 : index
      %c0_21 = arith.constant 0 : index
      %38 = vector.load %arg11[%c0_20, %c0_21] : memref<4x1xf32, #tpu.memory_space<vmem>>, vector<4x1xf32>
      tpu.vector_store %arg11[%c0_20, %c0_21], %34 {strides = array<i32>} : memref<4x1xf32, #tpu.memory_space<vmem>>, vector<4x1xf32>,
      %c0_22 = arith.constant 0 : index
      %c0_23 = arith.constant 0 : index
      %39 = vector.load %arg12[%c0_22, %c0_23] : memref<4x1xf32, #tpu.memory_space<vmem>>, vector<4x1xf32>
      tpu.vector_store %arg12[%c0_22, %c0_23], %37 {strides = array<i32>} : memref<4x1xf32, #tpu.memory_space<vmem>>, vector<4x1xf32>,
      %c0_24 = arith.constant 0 : index
      %c0_25 = arith.constant 0 : index
      %40 = vector.load %arg7[%c0_24, %c0_25] : memref<4x1xf32, #tpu.memory_space<vmem>>, vector<4x1xf32>
      tpu.vector_store %arg7[%c0_24, %c0_25], %22 {strides = array<i32>} : memref<4x1xf32, #tpu.memory_space<vmem>>, vector<4x1xf32>,
      %c0_26 = arith.constant 0 : index
      %c0_27 = arith.constant 0 : index
      %41 = vector.load %arg8[%c0_26, %c0_27] : memref<4x1xf32, #tpu.memory_space<vmem>>, vector<4x1xf32>
      tpu.vector_store %arg8[%c0_26, %c0_27], %29 {strides = array<i32>} : memref<4x1xf32, #tpu.memory_space<vmem>>, vector<4x1xf32>,
    } else {
    }
    %c1_i32_8 = arith.constant 1 : i32
    %17 = arith.cmpi eq, %arg0, %c1_i32_8 : i32
    %18 = arith.extui %17 : i1 to i32
    %c0_i32_9 = arith.constant 0 : i32
    %19 = arith.cmpi ne, %18, %c0_i32_9 : i32
    scf.if %19 {
      %c0 = arith.constant 0 : index
      %c0_10 = arith.constant 0 : index
      %c0_11 = arith.constant 0 : index
      %20 = vector.load %arg3[%c0, %c0_10, %c0_11] : memref<1x4x256xf32, #tpu.memory_space<vmem>>, vector<1x4x256xf32>
      %21 = vector.shape_cast %20 : vector<1x4x256xf32> to vector<4x256xf32>
      %c0_12 = arith.constant 0 : index
      %c0_13 = arith.constant 0 : index
      %22 = vector.load %arg11[%c0_12, %c0_13] : memref<4x1xf32, #tpu.memory_space<vmem>>, vector<4x1xf32>
      %23 = vector.broadcast %22 : vector<4x1xf32> to vector<4x256xf32>
      %24 = arith.mulf %21, %23 : vector<4x256xf32>
      %c0_14 = arith.constant 0 : index
      %c0_15 = arith.constant 0 : index
      %25 = vector.load %arg12[%c0_14, %c0_15] : memref<4x1xf32, #tpu.memory_space<vmem>>, vector<4x1xf32>
      %26 = vector.broadcast %25 : vector<4x1xf32> to vector<4x256xf32>
      %27 = arith.addf %24, %26 : vector<4x256xf32>
      %c0_16 = arith.constant 0 : index
      %c0_17 = arith.constant 0 : index
      %c0_18 = arith.constant 0 : index
      %28 = vector.load %arg6[%c0_16, %c0_17, %c0_18] : memref<1x4x256xf32, #tpu.memory_space<vmem>>, vector<1x4x256xf32>
      %29 = vector.shape_cast %28 : vector<1x4x256xf32> to vector<4x256xf32>
      %30 = vector.shape_cast %27 : vector<4x256xf32> to vector<1x4x256xf32>
      tpu.vector_store %arg6[%c0_16, %c0_17, %c0_18], %30 {strides = array<i32>} : memref<1x4x256xf32, #tpu.memory_space<vmem>>, vector<1x4x256xf32>,
    } else {
    }
    return
  }
  func.func @transform_0(%arg0: i32, %arg1: i32, %arg2: i32) -> (i32, i32, i32) {
    %c0_i32 = arith.constant 0 : i32
    %c0_i32_0 = arith.constant 0 : i32
    return %arg1, %c0_i32, %arg2 : i32, i32, i32
  }
  func.func @transform_1(%arg0: i32, %arg1: i32, %arg2: i32) -> (i32, i32) {
    %c0_i32 = arith.constant 0 : i32
    %c0_i32_0 = arith.constant 0 : i32
    %c0_i32_1 = arith.constant 0 : i32
    return %c0_i32, %c0_i32_0 : i32, i32
  }
  func.func @transform_2(%arg0: i32, %arg1: i32, %arg2: i32) -> (i32, i32) {
    %c0_i32 = arith.constant 0 : i32
    %c0_i32_0 = arith.constant 0 : i32
    %c0_i32_1 = arith.constant 0 : i32
    return %c0_i32, %c0_i32_0 : i32, i32
  }
  func.func @transform_3(%arg0: i32, %arg1: i32, %arg2: i32) -> (i32, i32, i32) {
    %0 = arith.muli %arg1, %arg0 : i32
    %1 = arith.muli %arg2, %arg0 : i32
    %c0_i32 = arith.constant 0 : i32
    %c0_i32_0 = arith.constant 0 : i32
    return %0, %c0_i32, %1 : i32, i32, i32
  }
  func.func @transform_4(%arg0: i32, %arg1: i32, %arg2: i32) -> (i32, i32) {
    %c0_i32 = arith.constant 0 : i32
    %c0_i32_0 = arith.constant 0 : i32
    %c0_i32_1 = arith.constant 0 : i32
    return %c0_i32, %c0_i32_0 : i32, i32
  }
  func.func @transform_5(%arg0: i32, %arg1: i32, %arg2: i32) -> (i32, i32) {
    %c0_i32 = arith.constant 0 : i32
    %c0_i32_0 = arith.constant 0 : i32
    %c0_i32_1 = arith.constant 0 : i32
    return %c0_i32, %c0_i32_0 : i32, i32
  }
}

</mosaic_0001>

<llo_original>
// kernel: batch_norm_conv_forward.1
$region0: #{batch_norm_conv_forward.1}
  #allocation0 [shape = 'u32[]', space=smem, size = 0x4, offset = 0x4, fixed_abs, tag = 'smem constant byte address 0x4 - core index']
  #allocation1 [shape = 'u32[144,128]{1,0:T(1,128)}', space=vmem, size = 0x12000, scoped, tag = 'internal scratch']
  #allocation2 [shape = 'f32[4,1]{1,0:T(4,128)}', space=vmem, size = 0x800, scoped, tag = 'scratch operand']
  #allocation3 [shape = 'f32[4,1]{1,0:T(4,128)}', space=vmem, size = 0x800, scoped, tag = 'scratch operand']
  #allocation4 [shape = 'f32[4,1]{1,0:T(4,128)}', space=vmem, size = 0x800, scoped, tag = 'scratch operand']
  #allocation5 [shape = 'f32[4,1]{1,0:T(4,128)}', space=vmem, size = 0x800, scoped, tag = 'scratch operand']
  %s0 = inlined_call_operand.vmem [shape: f32[2,4,256], index: 0, kind: input, shape index: {}]
  %s1 = inlined_call_operand.vmem [shape: f32[4,1], index: 1, kind: input, shape index: {}]
  %s2 = inlined_call_operand.vmem [shape: f32[4,1], index: 2, kind: input, shape index: {}]
  %s3 = inlined_call_operand.vmem [shape: f32[2,4,256], index: 3, kind: output, shape index: {0}]
  %s4 = inlined_call_operand.vmem [shape: f32[4,1], index: 4, kind: output, shape index: {1}]
  %s5 = inlined_call_operand.vmem [shape: f32[4,1], index: 5, kind: output, shape index: {2}]
  %6 = xla_tuple %s3, %s4, %s5
  %s7 = sld [smem:[#allocation0]]
  $region77: #{batch_norm_conv_forward.1} parent=0
    _
  %s9 = ssub.s32 1, %s7
  %s10 = scalar_select 0, %s9, %s7
  loop: start=0, step=1, limit=6
  $region2: #{batch_norm_conv_forward.1} parent=0 // loop_pre_header
    _
  $region3: #{batch_norm_conv_forward.1} parent=0 // loop_header
    %s12 = sphi 0, %s16
    %p13 = scmp.ge.s32.totalorder %s12, 6
    %s19 = sphi 0, %s38
    %s20 = sphi 0, %s34
    %s21 = sphi 0, %s30
    %s22 = sphi 0, %s19
    %s23 = sphi 0, %s20
    %s24 = sphi 0, %s21
    %s25 = sphi 0, %s22
    %s26 = sphi 0, %s23
    %s27 = sphi 0, %s24
    %s43 = sphi 0, %s45
    %s46 = sphi 0, %s43
    %s47 = sphi 0, %s46
    %s63 = sphi 0, %s47
    %s67 = sphi 0, %s67
    %s69 = sphi 0, %s67
    %s70 = sphi 0, %s69
    %s84 = sphi 0, %s70
    %s88 = sphi 0, %s88
    %s90 = sphi 0, %s88
    %s91 = sphi 0, %s90
    %s105 = sphi 0, %s91
    %s117 = sphi 0, %s119
    %s120 = sphi 0, %s117
    %s121 = sphi 0, %s120
    %s137 = sphi 0, %s121
    %s141 = sphi 0, %s141
    %s143 = sphi 0, %s141
    %s144 = sphi 0, %s143
    %s158 = sphi 0, %s144
    %s162 = sphi 0, %s162
    %s164 = sphi 0, %s162
    %s165 = sphi 0, %s164
    %s179 = sphi 0, %s165
  $region4: #{batch_norm_conv_forward.1} parent=0 // loop_header_branch
    %15 = sbr.rel (%p13) target = $region8
  $region5: #{batch_norm_conv_forward.1} parent=0 // loop_body
    %s17 = ssub.s32 %s12, 1
    %s18 = ssub.s32 %s12, 2
    %s28 = sadd.s32 1, %s21
    %p29 = scmp.ge.s32.totalorder %s28, 1
    %s30 = scalar_select %p29, 0, %s28
    %s31 = sadd.s32 1, %s20
    %s32 = scalar_select %p29, %s31, %s20
    %p33 = scmp.ge.s32.totalorder %s32, 2
    %s34 = scalar_select %p33, 0, %s32
    %s35 = sadd.s32 1, %s19
    %s36 = scalar_select %p33, %s35, %s19
    %p37 = scmp.ge.s32.totalorder %s36, 2
    %s38 = scalar_select %p37, 0, %s36
    %s39 = ssub.s32 %s20, %s34
    %s40 = ssub.s32 %s21, %s30
    %s41 = sor.u32 %s39, %s40
    %p42 = scmp.eq.s32.totalorder %s41, 0
    %s44 = sadd.s32 %s43, 1
    %s45 = scalar_select %p42, %s43, %s44
    %p48 = pneg %p42
    %p49 = scmp.eq.s32.totalorder %s12, 3
    %p50 = por %p48, %p49
    %p51 = scmp.ne.s32.totalorder %s43, %s46
    %p52 = scmp.eq.s32.totalorder %s12, 0
    %p53 = por %p51, %p52
    %p54 = scmp.ne.s32.totalorder %s43, %s46
    %p55 = scmp.eq.s32.totalorder %s17, 3
    %p56 = por %p54, %p55
    %p57 = scmp.ne.s32.totalorder %s46, %s47
    %p58 = scmp.eq.s32.totalorder %s17, 0
    %p59 = por %p57, %p58
    %p60 = scmp.ne.s32.totalorder %s46, %s47
    %p61 = scmp.eq.s32.totalorder %s18, 3
    %p62 = por %p60, %p61
    %p64 = scmp.ne.s32.totalorder %s47, %s63
    %p65 = scmp.eq.s32.totalorder %s18, 0
    %p66 = por %p64, %p65
    %s68 = sadd.s32 %s67, 1
    %p71 = scmp.eq.s32.totalorder %s12, 3
    %p72 = scmp.ne.s32.totalorder %s67, %s69
    %p73 = scmp.eq.s32.totalorder %s12, 0
    %p74 = por %p72, %p73
    %p75 = scmp.ne.s32.totalorder %s67, %s69
    %p76 = scmp.eq.s32.totalorder %s17, 3
    %p77 = por %p75, %p76
    %p78 = scmp.ne.s32.totalorder %s69, %s70
    %p79 = scmp.eq.s32.totalorder %s17, 0
    %p80 = por %p78, %p79
    %p81 = scmp.ne.s32.totalorder %s69, %s70
    %p82 = scmp.eq.s32.totalorder %s18, 3
    %p83 = por %p81, %p82
    %p85 = scmp.ne.s32.totalorder %s70, %s84
    %p86 = scmp.eq.s32.totalorder %s18, 0
    %p87 = por %p85, %p86
    %s89 = sadd.s32 %s88, 1
    %p92 = scmp.eq.s32.totalorder %s12, 3
    %p93 = scmp.ne.s32.totalorder %s88, %s90
    %p94 = scmp.eq.s32.totalorder %s12, 0
    %p95 = por %p93, %p94
    %p96 = scmp.ne.s32.totalorder %s88, %s90
    %p97 = scmp.eq.s32.totalorder %s17, 3
    %p98 = por %p96, %p97
    %p99 = scmp.ne.s32.totalorder %s90, %s91
    %p100 = scmp.eq.s32.totalorder %s17, 0
    %p101 = por %p99, %p100
    %p102 = scmp.ne.s32.totalorder %s90, %s91
    %p103 = scmp.eq.s32.totalorder %s18, 3
    %p104 = por %p102, %p103
    %p106 = scmp.ne.s32.totalorder %s91, %s105
    %p107 = scmp.eq.s32.totalorder %s18, 0
    %p108 = por %p106, %p107
    %s109 = smul.u32 %s20, %s19
    %s110 = smul.u32 %s21, %s19
    %s111 = smul.u32 %s34, %s38
    %s112 = smul.u32 %s30, %s38
    %s113 = ssub.s32 %s109, %s111
    %s114 = ssub.s32 %s110, %s112
    %s115 = sor.u32 %s113, %s114
    %p116 = scmp.eq.s32.totalorder %s115, 0
    %s118 = sadd.s32 %s117, 1
    %s119 = scalar_select %p116, %s117, %s118
    %p122 = pneg %p116
    %p123 = scmp.eq.s32.totalorder %s12, 3
    %p124 = por %p122, %p123
    %p125 = scmp.ne.s32.totalorder %s117, %s120
    %p126 = scmp.eq.s32.totalorder %s12, 0
    %p127 = por %p125, %p126
    %p128 = scmp.ne.s32.totalorder %s117, %s120
    %p129 = scmp.eq.s32.totalorder %s17, 3
    %p130 = por %p128, %p129
    %p131 = scmp.ne.s32.totalorder %s120, %s121
    %p132 = scmp.eq.s32.totalorder %s17, 0
    %p133 = por %p131, %p132
    %p134 = scmp.ne.s32.totalorder %s120, %s121
    %p135 = scmp.eq.s32.totalorder %s18, 3
    %p136 = por %p134, %p135
    %p138 = scmp.ne.s32.totalorder %s121, %s137
    %p139 = scmp.eq.s32.totalorder %s18, 0
    %p140 = por %p138, %p139
    %s142 = sadd.s32 %s141, 1
    %p145 = scmp.eq.s32.totalorder %s12, 3
    %p146 = scmp.ne.s32.totalorder %s141, %s143
    %p147 = scmp.eq.s32.totalorder %s12, 0
    %p148 = por %p146, %p147
    %p149 = scmp.ne.s32.totalorder %s141, %s143
    %p150 = scmp.eq.s32.totalorder %s17, 3
    %p151 = por %p149, %p150
    %p152 = scmp.ne.s32.totalorder %s143, %s144
    %p153 = scmp.eq.s32.totalorder %s17, 0
    %p154 = por %p152, %p153
    %p155 = scmp.ne.s32.totalorder %s143, %s144
    %p156 = scmp.eq.s32.totalorder %s18, 3
    %p157 = por %p155, %p156
    %p159 = scmp.ne.s32.totalorder %s144, %s158
    %p160 = scmp.eq.s32.totalorder %s18, 0
    %p161 = por %p159, %p160
    %s163 = sadd.s32 %s162, 1
    %p166 = scmp.eq.s32.totalorder %s12, 3
    %p167 = scmp.ne.s32.totalorder %s162, %s164
    %p168 = scmp.eq.s32.totalorder %s12, 0
    %p169 = por %p167, %p168
    %p170 = scmp.ne.s32.totalorder %s162, %s164
    %p171 = scmp.eq.s32.totalorder %s17, 3
    %p172 = por %p170, %p171
    %p173 = scmp.ne.s32.totalorder %s164, %s165
    %p174 = scmp.eq.s32.totalorder %s17, 0
    %p175 = por %p173, %p174
    %p176 = scmp.ne.s32.totalorder %s164, %s165
    %p177 = scmp.eq.s32.totalorder %s18, 3
    %p178 = por %p176, %p177
    %p180 = scmp.ne.s32.totalorder %s165, %s179
    %p181 = scmp.eq.s32.totalorder %s18, 0
    %p182 = por %p180, %p181
    %p183 = scmp.le.s32.totalorder 1, %s12
    %p184 = scmp.lt.s32.totalorder %s12, 5
    %p185 = pnand %p183, %p184
    %p186 = pneg %p185
    // Predicated region
    $region9: #{batch_norm_conv_forward.1} parent=5 // pred_check
      _
    $region10: #{batch_norm_conv_forward.1} parent=5 // pred_check_branch
      %188 = sbr.rel (%p185) target = $region12
    $region11: #{batch_norm_conv_forward.1} parent=5 // pred_region
      %s189 = ssub.s32 %s12, 1
      // Predicated region
      $region13: #{batch_norm_conv_forward.1} parent=11 // pred_check
        %p190 = pneg %p80
      $region14: #{batch_norm_conv_forward.1} parent=11 // pred_check_branch
        %192 = sbr.rel (%p190) target = $region16
      $region15: #{batch_norm_conv_forward.1} parent=11 // pred_region
        _
      $region16: #{batch_norm_conv_forward.1} parent=11 // pred_fallthru
        _
      // Predicated region
      $region17: #{batch_norm_conv_forward.1} parent=11 // pred_check
        %p193 = pneg %p101
      $region18: #{batch_norm_conv_forward.1} parent=11 // pred_check_branch
        %195 = sbr.rel (%p193) target = $region20
      $region19: #{batch_norm_conv_forward.1} parent=11 // pred_region
        _
      $region20: #{batch_norm_conv_forward.1} parent=11 // pred_fallthru
        _
    $region12: #{batch_norm_conv_forward.1} parent=5 // pred_fallthru
      _
    %p196 = scmp.lt.s32.totalorder %s12, 4
    // Predicated region
    $region21: #{batch_norm_conv_forward.1} parent=5 // pred_check
      %p197 = pneg %p196
    $region22: #{batch_norm_conv_forward.1} parent=5 // pred_check_branch
      %199 = sbr.rel (%p197) target = $region24
    $region23: #{batch_norm_conv_forward.1} parent=5 // pred_region
      // Predicated region
      $region25: #{batch_norm_conv_forward.1} parent=23 // pred_check
        %p200 = pneg %p53
      $region26: #{batch_norm_conv_forward.1} parent=23 // pred_check_branch
        %202 = sbr.rel (%p200) target = $region28
      $region27: #{batch_norm_conv_forward.1} parent=23 // pred_region
        %s203 = smul.u32 2, %s21
        %p204 = scmp.lt.s32.totalorder %s20, 1
        %s205 = scalar_select %p204, %s20, 1
        %p206 = scmp.lt.s32.totalorder %s203, 1
        %s207 = scalar_select %p206, %s203, 1
        %s208 = smul.addr %s205, 2
        %s209 = sadd.s32 %s207, %s208
        %s210 = smul.addr %s209, 4
        %s211 = scalar_lea.vmem %s0, %s210
        %s212 = smul.u32 2, %s21
      $region28: #{batch_norm_conv_forward.1} parent=23 // pred_fallthru
        _
    $region24: #{batch_norm_conv_forward.1} parent=5 // pred_fallthru
      _
    %p213 = scmp.le.s32.totalorder 1, %s12
    %p214 = scmp.lt.s32.totalorder %s12, 5
    %p215 = pnand %p213, %p214
    %p216 = pneg %p215
    // Predicated region
    $region29: #{batch_norm_conv_forward.1} parent=5 // pred_check
      _
    $region30: #{batch_norm_conv_forward.1} parent=5 // pred_check_branch
      %218 = sbr.rel (%p215) target = $region32
    $region31: #{batch_norm_conv_forward.1} parent=5 // pred_region
      %s219 = ssub.s32 %s12, 1
      %s220 = smul.u32 2, %s24
      %p221 = scmp.lt.s32.totalorder %s23, 1
      %s222 = scalar_select %p221, %s23, 1
      %p223 = scmp.lt.s32.totalorder %s220, 1
      %s224 = scalar_select %p223, %s220, 1
      %s225 = smul.addr %s222, 2
      %s226 = sadd.s32 %s224, %s225
      %s227 = smul.addr %s226, 4
      %s228 = scalar_lea.vmem %s0, %s227
      %p229 = pneg %p59
      %p230 = pneg %p56
      %p231 = pneg %p80
      %p232 = pneg %p77
      %p233 = pneg %p101
      %p234 = pneg %p98
      %p235 = pneg %p133
      %p236 = pneg %p130
      %s237 = smul.u32 %s23, %s22
      %s238 = smul.u32 %s24, %s22
      %s239 = smul.u32 2, %s238
      %p240 = scmp.lt.s32.totalorder %s237, 1
      %s241 = scalar_select %p240, %s237, 1
      %p242 = scmp.lt.s32.totalorder %s239, 1
      %s243 = scalar_select %p242, %s239, 1
      %s244 = smul.addr %s241, 2
      %s245 = sadd.s32 %s243, %s244
      %s246 = smul.addr %s245, 4
      %s247 = scalar_lea.vmem %s3, %s246
      %p248 = pneg %p154
      %p249 = pneg %p151
      %p250 = pneg %p175
      %p251 = pneg %p172
      %s252 = smul.u32 2, %s24
      %p253 = scmp.lt.s32.totalorder %s23, 1
      %s254 = scalar_select %p253, %s23, 1
      %p255 = scmp.lt.s32.totalorder %s252, 1
      %s256 = scalar_select %p255, %s252, 1
      %s257 = smul.addr %s254, 2
      %s258 = sadd.s32 %s256, %s257
      %s259 = smul.addr %s258, 4
      %s260 = scalar_lea.vmem %s0, %s259
      %s261 = smul.u32 2, %s24
      %s262 = smul.u32 %s23, %s22
      %s263 = smul.u32 %s24, %s22
      %s264 = smul.u32 2, %s263
      %p265 = scmp.lt.s32.totalorder %s262, 1
      %s266 = scalar_select %p265, %s262, 1
      %p267 = scmp.lt.s32.totalorder %s264, 1
      %s268 = scalar_select %p267, %s264, 1
      %s269 = smul.addr %s266, 2
      %s270 = sadd.s32 %s268, %s269
      %s271 = smul.addr %s270, 4
      %s272 = scalar_lea.vmem %s3, %s271
      %s273 = smul.u32 %s23, %s22
      %s274 = smul.u32 %s24, %s22
      %s275 = smul.u32 2, %s274
      %p276 = scmp.eq.s32.totalorder %s23, 0
      %p277 = scmp.eq.s32.totalorder %s24, 0
      %p278 = pnand %p276, %p277
      %p279 = pneg %p278
      %p280 = scmp.eq.s32.totalorder %s23, 1
      %p281 = pnand %p280, %p277
      %p282 = pneg %p281
      %p283 = scmp.eq.s32.totalorder %s22, 0
      %p284 = pnand %p283, %p279
      %p285 = pneg %p284
      // Predicated region
      $region33: #{batch_norm_conv_forward.1} parent=31 // pred_check
        _
      $region34: #{batch_norm_conv_forward.1} parent=31 // pred_check_branch
        %287 = sbr.rel (%p284) target = $region36
      $region35: #{batch_norm_conv_forward.1} parent=31 // pred_region
        %vm288 = vcmask 3072
        %289 = vst.msk [vmem:[#allocation2] sm:$0xf] %vm288, 0.0
        %290 = vst.msk [vmem:[#allocation3] sm:$0xf] %vm288, 0.0
      $region36: #{batch_norm_conv_forward.1} parent=31 // pred_fallthru
        _
      // Predicated region
      $region37: #{batch_norm_conv_forward.1} parent=31 // pred_check
        %p291 = pneg %p283
      $region38: #{batch_norm_conv_forward.1} parent=31 // pred_check_branch
        %293 = sbr.rel (%p291) target = $region40
      $region39: #{batch_norm_conv_forward.1} parent=31 // pred_region
        %v294 = vld [vmem:[%s260] sm:$0xff]
        %v295 = vld [vmem:[#allocation2] sm:$0xf]
        %v297 = vcombine.high %v294, %v294
        %vm299 = vcmask 1043456
        %v300 = vsel %vm299, %v294, 0.0
        %v301 = vsel %vm299, %v297, 0.0
        %v302 = vadd.f32 %v300, %v301
        %303 = vadd.xlane.f32.xlu0 %v302
        %v304 = vpop.xlane.xlu0 %303
        %v305 = vadd.f32 %v295, %v304
        %vm306 = vcmask 3072
        %307 = vst.msk [vmem:[#allocation2] sm:$0xf] %vm306, %v305
        %v308 = vld [vmem:[#allocation3] sm:$0xf]
        %v309 = vmul.f32 %v294, %v294
        %v311 = vcombine.high %v309, %v309
        %v313 = vsel %vm299, %v309, 0.0
        %v314 = vsel %vm299, %v311, 0.0
        %v315 = vadd.f32 %v313, %v314
        %316 = vadd.xlane.f32.xlu0 %v315
        %v317 = vpop.xlane.xlu0 %316
        %v318 = vadd.f32 %v308, %v317
        %319 = vst.msk [vmem:[#allocation3] sm:$0xf] %vm306, %v318
      $region40: #{batch_norm_conv_forward.1} parent=31 // pred_fallthru
        _
      %p320 = pnand %p283, %p282
      %p321 = pneg %p320
      // Predicated region
      $region41: #{batch_norm_conv_forward.1} parent=31 // pred_check
        _
      $region42: #{batch_norm_conv_forward.1} parent=31 // pred_check_branch
        %323 = sbr.rel (%p320) target = $region44
      $region43: #{batch_norm_conv_forward.1} parent=31 // pred_region
        %v324 = vld [vmem:[#allocation2] sm:$0xf]
        %v325 = vmul.f32 %v324, 0.001953125
        %v326 = vld [vmem:[#allocation3] sm:$0xf]
        %v327 = vmul.f32 %v326, 0.001953125
        %v328 = vmul.f32 %v325, %v325
        %v329 = vsub.f32 %v327, %v328
        %v330 = vmax.f32 %v329, 0.0
        %v331 = vld [vmem:[%s1] sm:$0xf]
        %v332 = vadd.f32 %v330, 1e-05
        %v333 = vrsqrt.pop %v332
        %v334 = vmul.f32 %v331, %v333
        %v335 = vld [vmem:[%s2] sm:$0xf]
        %v336 = vmul.f32 %v325, %v334
        %v337 = vsub.f32 %v335, %v336
        %vm338 = vcmask 3072
        %339 = vst.msk [vmem:[#allocation4] sm:$0xf] %vm338, %v334
        %340 = vst.msk [vmem:[#allocation5] sm:$0xf] %vm338, %v337
        %341 = vst.msk [vmem:[%s4] sm:$0xf] %vm338, %v325
        %342 = vst.msk [vmem:[%s5] sm:$0xf] %vm338, %v330
      $region44: #{batch_norm_conv_forward.1} parent=31 // pred_fallthru
        _
      %p343 = scmp.eq.s32.totalorder %s22, 1
      // Predicated region
      $region45: #{batch_norm_conv_forward.1} parent=31 // pred_check
        %p344 = pneg %p343
      $region46: #{batch_norm_conv_forward.1} parent=31 // pred_check_branch
        %346 = sbr.rel (%p344) target = $region48
      $region47: #{batch_norm_conv_forward.1} parent=31 // pred_region
        %v347 = vld [vmem:[%s260] sm:$0xff]
        %v348 = vld [vmem:[#allocation4] sm:$0xf]
        %350 = vset.pattern.permute.xlu0 0
        %351 = vperm.xlu0 %350, %v348
        %v352 = vpop.permute.xlu0 %351
        %v354 = vunpack.c.l.s4 839922192
        %v355 = vunpack.c.0.s8 %v354
        %v356 = vlaneseq
        %v357 = vshrl.u32 %v356, 7
        %v358 = vsub.s32 %v355, %v357
        %v359 = vrot.slane %v352, %v358
        %v361 = vmul.f32 %v347, %v359
        %v362 = vld [vmem:[#allocation5] sm:$0xf]
        %364 = vset.pattern.permute.xlu0 0
        %365 = vperm.xlu0 %364, %v362
        %v366 = vpop.permute.xlu0 %365
        %v368 = vunpack.c.l.s4 839922192
        %v369 = vunpack.c.0.s8 %v368
        %v370 = vlaneseq
        %v371 = vshrl.u32 %v370, 7
        %v372 = vsub.s32 %v369, %v371
        %v373 = vrot.slane %v366, %v372
        %v375 = vadd.f32 %v361, %v373
        %376 = vst [vmem:[%s272] sm:$0xff] %v375
      $region48: #{batch_norm_conv_forward.1} parent=31 // pred_fallthru
        _
      %s377 = smul.u32 %s23, %s22
      %s378 = smul.u32 %s24, %s22
      %s379 = smul.u32 2, %s378
      %p380 = scmp.lt.s32.totalorder %s377, 1
      %s381 = scalar_select %p380, %s377, 1
      %p382 = scmp.lt.s32.totalorder %s379, 1
      %s383 = scalar_select %p382, %s379, 1
      %s384 = smul.addr %s381, 2
      %s385 = sadd.s32 %s383, %s384
      %s386 = smul.addr %s385, 4
      %s387 = scalar_lea.vmem %s3, %s386
      // Predicated region
      $region49: #{batch_norm_conv_forward.1} parent=31 // pred_check
        %p388 = pneg %p130
      $region50: #{batch_norm_conv_forward.1} parent=31 // pred_check_branch
        %390 = sbr.rel (%p388) target = $region52
      $region51: #{batch_norm_conv_forward.1} parent=31 // pred_region
        %s391 = smul.u32 %s23, %s22
        %s392 = smul.u32 %s24, %s22
        %s393 = smul.u32 2, %s392
      $region52: #{batch_norm_conv_forward.1} parent=31 // pred_fallthru
        _
      // Predicated region
      $region53: #{batch_norm_conv_forward.1} parent=31 // pred_check
        %p394 = pneg %p151
      $region54: #{batch_norm_conv_forward.1} parent=31 // pred_check_branch
        %396 = sbr.rel (%p394) target = $region56
      $region55: #{batch_norm_conv_forward.1} parent=31 // pred_region
        _
      $region56: #{batch_norm_conv_forward.1} parent=31 // pred_fallthru
        _
      // Predicated region
      $region57: #{batch_norm_conv_forward.1} parent=31 // pred_check
        %p397 = pneg %p172
      $region58: #{batch_norm_conv_forward.1} parent=31 // pred_check_branch
        %399 = sbr.rel (%p397) target = $region60
      $region59: #{batch_norm_conv_forward.1} parent=31 // pred_region
        _
      $region60: #{batch_norm_conv_forward.1} parent=31 // pred_fallthru
        _
      // Predicated region
      $region61: #{batch_norm_conv_forward.1} parent=31 // pred_check
        %p400 = pneg %p151
      $region62: #{batch_norm_conv_forward.1} parent=31 // pred_check_branch
        %402 = sbr.rel (%p400) target = $region64
      $region63: #{batch_norm_conv_forward.1} parent=31 // pred_region
        _
      $region64: #{batch_norm_conv_forward.1} parent=31 // pred_fallthru
        _
      // Predicated region
      $region65: #{batch_norm_conv_forward.1} parent=31 // pred_check
        %p403 = pneg %p172
      $region66: #{batch_norm_conv_forward.1} parent=31 // pred_check_branch
        %405 = sbr.rel (%p403) target = $region68
      $region67: #{batch_norm_conv_forward.1} parent=31 // pred_region
        _
      $region68: #{batch_norm_conv_forward.1} parent=31 // pred_fallthru
        _
    $region32: #{batch_norm_conv_forward.1} parent=5 // pred_fallthru
      _
    %p406 = scmp.le.s32.totalorder 2, %s12
    // Predicated region
    $region69: #{batch_norm_conv_forward.1} parent=5 // pred_check
      %p407 = pneg %p406
    $region70: #{batch_norm_conv_forward.1} parent=5 // pred_check_branch
      %409 = sbr.rel (%p407) target = $region72
    $region71: #{batch_norm_conv_forward.1} parent=5 // pred_region
      %s410 = ssub.s32 %s12, 2
      // Predicated region
      $region73: #{batch_norm_conv_forward.1} parent=71 // pred_check
        %p411 = pneg %p136
      $region74: #{batch_norm_conv_forward.1} parent=71 // pred_check_branch
        %413 = sbr.rel (%p411) target = $region76
      $region75: #{batch_norm_conv_forward.1} parent=71 // pred_region
        %s414 = smul.u32 %s26, %s25
        %s415 = smul.u32 %s27, %s25
        %s416 = smul.u32 2, %s415
        %p417 = scmp.lt.s32.totalorder %s414, 1
        %s418 = scalar_select %p417, %s414, 1
        %p419 = scmp.lt.s32.totalorder %s416, 1
        %s420 = scalar_select %p419, %s416, 1
        %s421 = smul.addr %s418, 2
        %s422 = sadd.s32 %s420, %s421
        %s423 = smul.addr %s422, 4
        %s424 = scalar_lea.vmem %s3, %s423
      $region76: #{batch_norm_conv_forward.1} parent=71 // pred_fallthru
        _
    $region72: #{batch_norm_conv_forward.1} parent=5 // pred_fallthru
      _
  $region6: #{batch_norm_conv_forward.1} parent=0 // loop_footer
    %s16 = sadd.s32 1, %s12
  $region7: #{batch_norm_conv_forward.1} parent=0 // loop_footer_branch
    %11 = sbr.rel target = $region3
  $region8: #{batch_norm_conv_forward.1} parent=0 // loop_exit
    _

</llo_original>
